<compile_context>
chip_gen: v5e
topology: v5e:2x2
jax: 0.10.0
libtpu: 0.0.40
codegen_flags: <defaults>
</compile_context>

<pallas_src>
import functools

import jax
import jax.numpy as jnp
from jax.experimental import pallas as pl
from jax.experimental.pallas import tpu as pltpu

COEF = 0.97


def _round_up(n: int, m: int) -> int:
    return ((n + m - 1) // m) * m


def _preemphasis_kernel(x_ref, halo_ref, o_ref, *, coef):
    x = x_ref[...]                               # (B, t_tile) current time tile
    left = halo_ref[pl.program_id(0)]            # (B, 1): left neighbour of this tile
    # prev[:, t] = x[:, t-1]; lane 0 wraps around and is patched with the halo.
    prev = pltpu.roll(x, shift=1, axis=1)        # XLU rotate (free under DMA bound)
    col = jax.lax.broadcasted_iota(jnp.int32, x.shape, dimension=1)
    prev = jnp.where(col == 0, left, prev)
    # Single full-tile, lane-dense store (no separate 1-lane boundary store).
    o_ref[...] = (x - coef * prev).astype(o_ref.dtype)


def pre_emphasis(x: jax.Array, coef: float = COEF, *, t_tile: int | None = None) -> jax.Array:
    """x: (B, T) float waveform -> (B, T) pre-emphasized waveform."""
    assert x.ndim == 2, "The number of dimensions of inputs tensor must be 2!"
    B, T = x.shape
    assert T >= 2, "reflect padding of width 1 requires T >= 2"
    itemsize = x.dtype.itemsize
    B_sub = _round_up(B, 8)  # sublane-padded rows: VMEM footprint only, never DMA'd

    # Lane tile over time: ~4 MiB VMEM block slots (amortize per-step overhead,
    # conservative enough that 4x double-buffering fits v7x's 64 MiB VMEM).
    if t_tile is None:
        target_block_vmem = 4 << 20
        t_tile = _round_up(max(128, target_block_vmem // (itemsize * B_sub)), 128)
    t_tile = min(t_tile, _round_up(T, 128))
    assert t_tile > 0 and t_tile % 128 == 0
    n_t = pl.cdiv(T, t_tile)

    # Halo: left-neighbour column of every time tile, gathered from the
    # UNPADDED input (negligible bytes).
    #   tile 0   -> x[:, 1]              (reflect padding)
    #   tile j>0 -> x[:, j*t_tile - 1]   (last column of the previous tile)
    idx = jnp.arange(n_t, dtype=jnp.int32) * t_tile - 1
    idx = idx.at[0].set(1)
    halo = jnp.transpose(x[:, idx])[:, :, None]   # (n_t, B, 1), lives whole in VMEM

    # VMEM budget: 2x in-block + 2x out-block (double buffered) + halo + slack.
    block_vmem = B_sub * t_tile * itemsize
    halo_vmem = n_t * B_sub * 128 * itemsize
    vmem_limit = int(min(max(4 * block_vmem + halo_vmem + (2 << 20), 16 << 20), 48 << 20))

    out = pl.pallas_call(
        functools.partial(_preemphasis_kernel, coef=coef),
        out_shape=jax.ShapeDtypeStruct((B, T), x.dtype),
        grid=(n_t,),
        in_specs=[
            # Time tile of the waveform; ragged last block is masked by Pallas.
            pl.BlockSpec((B, t_tile), lambda j: (0, j)),
            # Tiny per-tile halo table, resident in VMEM for the whole kernel.
            pl.BlockSpec(memory_space=pltpu.MemorySpace.VMEM),
        ],
        out_specs=pl.BlockSpec((B, t_tile), lambda j: (0, j)),
        compiler_params=pltpu.CompilerParams(
            # Tiles are independent -> shardable across v7x's 2 TensorCores.
            dimension_semantics=("parallel",),
            vmem_limit_bytes=vmem_limit,
        ),
        cost_estimate=pl.CostEstimate(
            flops=2 * B * T,
            transcendentals=0,
            bytes_accessed=2 * B * T * itemsize + 3 * n_t * B * itemsize,
        ),
    )(x, halo)
    return out


def pre_emphasis_ref(x: jax.Array, coef: float = COEF) -> jax.Array:
    """Pure-JAX reference matching the PyTorch module."""
    padded = jnp.concatenate([x[:, 1:2], x], axis=1)  # reflect pad (1, 0)
    return padded[:, 1:] - coef * padded[:, :-1]


if __name__ == "__main__":
    key = jax.random.PRNGKey(0)
    k1, k2 = jax.random.split(key)

    # Small (batch, time) waveform consistent with the module's 2-D input.
    B, T = 4, 256
    x = jax.random.normal(k1, (B, T), dtype=jnp.float32)
    y = pre_emphasis(x)
    jax.block_until_ready(y)
    assert y.shape == (B, T) and y.dtype == jnp.float32
    assert jnp.allclose(y, pre_emphasis_ref(x), atol=1e-6, rtol=1e-6), "mismatch vs reference"

    # Multi-tile path: cross-tile halo + reflect boundary + ragged last block
    # + batch not a multiple of 8 (no padding anywhere).
    x2 = jax.random.normal(k2, (3, 700), dtype=jnp.float32)
    y2 = pre_emphasis(x2, t_tile=128)
    jax.block_until_ready(y2)
    assert jnp.allclose(y2, pre_emphasis_ref(x2), atol=1e-6, rtol=1e-6), "multi-tile mismatch"

    print("KERNEL_OK")
</pallas_src>

<mosaic_0001>
module attributes {stable_mosaic.version = 11 : i64} {
  func.func @_preemphasis_kernel(%arg0: i32, %arg1: memref<4x256xf32, #tpu.memory_space<vmem>>, %arg2: memref<1x4x1xf32, #tpu.memory_space<vmem>>, %arg3: memref<4x256xf32, #tpu.memory_space<vmem>>) attributes {dimension_semantics = [#tpu.dimension_semantics<parallel>], iteration_bounds = array<i64: 1>, scalar_prefetch = 0 : i64, scratch_operands = 0 : i64, tpu.core_type = #tpu.core_type<tc>, window_params = [{transform_indices = @transform_0, window_bounds = array<i64: 4, 256>}, {pipeline_mode = #tpu.pipeline_mode<synchronous>, transform_indices = @transform_1, window_bounds = array<i64: 1, 4, 1>}, {transform_indices = @transform_2, window_bounds = array<i64: 4, 256>}]} {
    %c0 = arith.constant 0 : index
    %c0_0 = arith.constant 0 : index
    %0 = vector.load %arg1[%c0, %c0_0] : memref<4x256xf32, #tpu.memory_space<vmem>>, vector<4x256xf32>
    %1 = arith.index_cast %arg0 : i32 to index
    %c0_1 = arith.constant 0 : index
    %c0_2 = arith.constant 0 : index
    %2 = vector.load %arg2[%1, %c0_1, %c0_2] : memref<1x4x1xf32, #tpu.memory_space<vmem>>, vector<1x4x1xf32>
    %3 = vector.shape_cast %2 : vector<1x4x1xf32> to vector<4x1xf32>
    %c1_i32 = arith.constant 1 : i32
    %4 = tpu.dynamic_rotate %0 by %c1_i32 dim 1 : vector<4x256xf32>, i32 -> vector<4x256xf32>
    %5 = tpu.iota {dimensions = array<i32: 1>} : vector<4x256xi32>
    %c0_i32 = arith.constant 0 : i32
    %6 = vector.broadcast %c0_i32 : i32 to vector<4x256xi32>
    %7 = arith.cmpi eq, %5, %6 : vector<4x256xi32>
    %8 = vector.shape_cast %3 : vector<4x1xf32> to vector<4x1xf32>
    %9 = vector.broadcast %8 : vector<4x1xf32> to vector<4x256xf32>
    %10 = arith.select %7, %9, %4 : vector<4x256xi1>, vector<4x256xf32>
    %cst = arith.constant 9.700000e-01 : f32
    %11 = vector.broadcast %cst : f32 to vector<4x256xf32>
    %12 = arith.mulf %11, %10 : vector<4x256xf32>
    %13 = arith.subf %0, %12 : vector<4x256xf32>
    %c0_3 = arith.constant 0 : index
    %c0_4 = arith.constant 0 : index
    %14 = vector.load %arg3[%c0_3, %c0_4] : memref<4x256xf32, #tpu.memory_space<vmem>>, vector<4x256xf32>
    tpu.vector_store %arg3[%c0_3, %c0_4], %13 {strides = array<i32>} : memref<4x256xf32, #tpu.memory_space<vmem>>, vector<4x256xf32>,
    return
  }
  func.func @transform_0(%arg0: i32) -> (i32, i32) {
    %c0_i32 = arith.constant 0 : i32
    %c0_i32_0 = arith.constant 0 : i32
    return %c0_i32, %arg0 : i32, i32
  }
  func.func @transform_1(%arg0: i32) -> (i32, i32, i32) {
    %c0_i32 = arith.constant 0 : i32
    %c0_i32_0 = arith.constant 0 : i32
    %c0_i32_1 = arith.constant 0 : i32
    %c0_i32_2 = arith.constant 0 : i32
    return %c0_i32, %c0_i32_0, %c0_i32_1 : i32, i32, i32
  }
  func.func @transform_2(%arg0: i32) -> (i32, i32) {
    %c0_i32 = arith.constant 0 : i32
    %c0_i32_0 = arith.constant 0 : i32
    return %c0_i32, %arg0 : i32, i32
  }
}

</mosaic_0001>

<llo_original>
// kernel: tpu_custom_call.1
$region0: #{tpu_custom_call.1}
  #allocation0 [shape = 'u32[]', space=smem, size = 0x4, offset = 0x4, fixed_abs, tag = 'smem constant byte address 0x4 - core index']
  #allocation1 [shape = 'u32[72,128]{1,0:T(1,128)}', space=vmem, size = 0x9000, scoped, tag = 'internal scratch']
  %s0 = inlined_call_operand.hbm [shape: f32[4,256], index: 0, kind: input, shape index: {}]
  %s1 = inlined_call_operand.vmem [shape: f32[1,4,1], index: 1, kind: input, shape index: {}]
  %s2 = inlined_call_operand.hbm [shape: f32[4,256], index: 2, kind: output, shape index: {}]
  %s3 = sld [smem:[#allocation0]]
  $region22: #{tpu_custom_call.1} parent=0
    _
  %s5 = ssub.s32 1, %s3
  %s6 = scalar_select 0, %s5, %s3
  $region1: #{tpu_custom_call.1} parent=0
    #allocation2 [shape = 'u8[4096]{0}', space=vmem, size = 0x1000, scoped, tag = 'input window, operand 0, single buffered']
    #allocation3 [shape = 's32[1]{0}', space=sflag, size = 0x4, scoped, tag = 'scoped memory for tpu_custom_call.1']
    #allocation4 [shape = 's32[1]{0}', space=sflag, size = 0x4, scoped, tag = 'scoped memory for tpu_custom_call.1']
    #allocation5 [shape = 'u8[4096]{0}', space=vmem, size = 0x1000, scoped, tag = 'output window, operand 0, single buffered']
    %7 = vsyncpa [#allocation3], 0
    %8 = vsyncpa [#allocation4], 0
    // Predicated region
    $region2: #{tpu_custom_call.1} parent=1 // pred_check
      _
    $region3: #{tpu_custom_call.1} parent=1 // pred_check_branch
      %10 = sbr.rel (0) target = $region5
    $region4: #{tpu_custom_call.1} parent=1 // pred_region
      %12 = vsyncadd [#allocation3], 0
      %s14 = sshll.u32 %s0, 4
      %s15 = int_to_ptr.hbm [resolvable:$true] %s14
      %s16 = sshll.u32 [#allocation2], 4
      %s17 = int_to_ptr.vmem [resolvable:$true] %s16
      %19 = dma.hbm_to_vmem [thread:$0]  %s15, 128, %s17, [#allocation3]
    $region5: #{tpu_custom_call.1} parent=1 // pred_fallthru
      _
    // Predicated region
    $region6: #{tpu_custom_call.1} parent=1 // pred_check
      _
    $region7: #{tpu_custom_call.1} parent=1 // pred_check_branch
      %21 = sbr.rel (0) target = $region9
    $region8: #{tpu_custom_call.1} parent=1 // pred_region
      _
    $region9: #{tpu_custom_call.1} parent=1 // pred_fallthru
      _
    // Predicated region
    $region10: #{tpu_custom_call.1} parent=1 // pred_check
      _
    $region11: #{tpu_custom_call.1} parent=1 // pred_check_branch
      %23 = sbr.rel (0) target = $region13
    $region12: #{tpu_custom_call.1} parent=1 // pred_region
      %25 = dma.done [#allocation3], 128
    $region13: #{tpu_custom_call.1} parent=1 // pred_fallthru
      _
    %v26 = vld [vmem:[#allocation2] sm:$0xff]
    %s27 = smul.u32 0, 4
    %s28 = scalar_lea.vmem %s1, %s27
    %v29 = vld [vmem:[%s28] sm:$0xf]
    %31 = vst [vmem:[#allocation1] ss:$2 sm:$0xff] %v26
    %v32 = vld.sshfl [vmem:[#allocation1] sm:$0xff pattern:$0x75316420]
    %v33 = vld.sshfl [vmem:[#allocation1 + $0x8] sm:$0xff pattern:$0x75316420]
    %36 = vrot.lane.b32.xlu0 %v32, 1
    %v37 = vpop.permute.xlu0 %36
    %38 = vrot.lane.b32.xlu0 %v33, 1
    %v39 = vpop.permute.xlu0 %38
    %v40 = vlaneseq
    %v41 = vand.u32 %v40, 127
    %vm42 = vcmp.lt.s32.totalorder %v41, 1
    %v43 = vsel %vm42, %v37, %v39
    %v44 = vsel %vm42, %v39, %v37
    %v45 = vadd.s32 %v41, 128
    %vm46 = vcmp.eq.s32.totalorder %v41, 0
    %vm47 = vcmp.eq.s32.totalorder %v45, 0
    %49 = vset.pattern.permute.xlu0 0
    %50 = vperm.xlu0 %49, %v29
    %v51 = vpop.permute.xlu0 %50
    %v53 = vsel %vm46, %v51, %v44
    %v54 = vsel %vm47, %v51, %v43
    %v55 = vmul.f32 %v53, 0.97
    %v56 = vmul.f32 %v54, 0.97
    %v59 = vrot.slane %v56, 4
    %vm60 = vcmask 1043456
    %v61 = vsel %vm60, %v55, %v59
    %v63 = vsub.f32 %v26, %v61
    %64 = vst [vmem:[#allocation5] sm:$0xff] %v63
    // Predicated region
    $region14: #{tpu_custom_call.1} parent=1 // pred_check
      _
    $region15: #{tpu_custom_call.1} parent=1 // pred_check_branch
      %66 = sbr.rel (0) target = $region17
    $region16: #{tpu_custom_call.1} parent=1 // pred_region
      %68 = vsyncadd [#allocation4], 0
      %s70 = sshll.u32 [#allocation5], 4
      %s71 = int_to_ptr.vmem [resolvable:$true] %s70
      %s72 = sshll.u32 %s2, 4
      %s73 = int_to_ptr.hbm [resolvable:$true] %s72
      %75 = dma.vmem_to_hbm [thread:$0]  %s71, 128, %s73, [#allocation4]
    $region17: #{tpu_custom_call.1} parent=1 // pred_fallthru
      _
    // Predicated region
    $region18: #{tpu_custom_call.1} parent=1 // pred_check
      _
    $region19: #{tpu_custom_call.1} parent=1 // pred_check_branch
      %77 = sbr.rel (0) target = $region21
    $region20: #{tpu_custom_call.1} parent=1 // pred_region
      %79 = dma.done [#allocation4], 128
    $region21: #{tpu_custom_call.1} parent=1 // pred_fallthru
      _
    %80 = vsyncpa [#allocation3], 1
    %81 = vsyncpa [#allocation4], 1

</llo_original>
